<compile_context>
chip_gen: v7x
topology: tpu7x:2x2x1
jax: 0.10.0
libtpu: 0.0.40
codegen_flags: <defaults>
</compile_context>

<pallas_src>
import math
import functools

import jax
import jax.numpy as jnp
from jax.experimental import pallas as pl
from jax.experimental.pallas import tpu as pltpu  # noqa: F401  (future tiled path: CompilerParams)


# ----------------------------- model hyper-params -----------------------------
INPUT_DIM = 32          # embed_dim == input_dim in EncoderBlock
NUM_HEADS = 4
HEAD_DIM = INPUT_DIM // NUM_HEADS
DIM_FF = 64
LN_EPS = 1e-5
BATCH = 2
SEQ = 8
LANES = 128             # packed slab lane width


# ------------------------------- Pallas kernel --------------------------------
def encoder_block_kernel(x_ref, w_ref, vec_ref, out_ref, *, num_heads, seq_len, dim_ff):
    N, D = x_ref.shape                      # N = B * S (flattened rows), D = embed dim
    H = num_heads
    hd = D // H
    FF = dim_ff

    # ---- unpack the packed weight slab (static sublane/lane slices; free) ----
    wqkv = w_ref[0:D, :]                    # (D, 128) bf16, cols 0:3D = [Wq | Wk | Wv]
    wo = w_ref[D:2 * D, 0:D]                # (D, D)   bf16
    w1 = w_ref[2 * D:3 * D, 0:FF]           # (D, FF)  bf16
    w2 = w_ref[3 * D:3 * D + FF, 0:D]       # (FF, D)  bf16

    vec = vec_ref[...]                      # (8, 128) f32 packed small params
    bqkv = vec[0, :]                        # (128,) fused qkv bias (zeros in pad lanes)
    bo, b1, b2 = vec[1, 0:D], vec[2, 0:FF], vec[3, 0:D]
    g1, be1 = vec[4, 0:D], vec[5, 0:D]
    g2, be2 = vec[6, 0:D], vec[7, 0:D]

    x = x_ref[...]                          # (N, D) f32
    xb = x.astype(jnp.bfloat16)

    # ---- fused Q/K/V projection: ONE (N,32)@(32,128) MXU push ----
    qkv = jnp.dot(xb, wqkv, preferred_element_type=jnp.float32) + bqkv    # (N, 128) f32
    # q already carries 1/sqrt(head_dim) (folded into Wq / bq at prep time).
    qkv_bf = qkv.astype(jnp.bfloat16)       # single cast pass over the fused result

    # per-head views, head-major column ordering set up at prep time
    q = jnp.stack([qkv_bf[:, 0 * D + h * hd:0 * D + (h + 1) * hd] for h in range(H)], axis=0)
    k = jnp.stack([qkv_bf[:, 1 * D + h * hd:1 * D + (h + 1) * hd] for h in range(H)], axis=0)
    v = jnp.stack([qkv_bf[:, 2 * D + h * hd:2 * D + (h + 1) * hd] for h in range(H)], axis=0)
    # q/k/v: (H, N, hd) bf16, leading batch dim for the MXU

    # ---- attention logits, batched over heads ----
    dn_qk = (((2,), (2,)), ((0,), (0,)))    # 'hqd,hkd->hqk'
    logits = jax.lax.dot_general(q, k, dn_qk,
                                 preferred_element_type=jnp.float32)     # (H, N, N)

    # ---- block-diagonal mask over the flattened batch: one (N,N) additive mask ----
    rows = jax.lax.broadcasted_iota(jnp.int32, (N, N), 0)
    cols = jax.lax.broadcasted_iota(jnp.int32, (N, N), 1)
    if (seq_len & (seq_len - 1)) == 0:      # power of two -> shift, no integer divide
        shift = seq_len.bit_length() - 1
        same_batch = (rows >> shift) == (cols >> shift)
    else:
        same_batch = (rows // seq_len) == (cols // seq_len)
    neg_mask = jnp.where(same_batch, 0.0, -1e30).astype(jnp.float32)      # (N, N)
    logits = logits + neg_mask[None, :, :]

    # ---- softmax with deferred normalization (f32 on VPU; reciprocal on EUP) ----
    m = jnp.max(logits, axis=-1, keepdims=True)
    p = jnp.exp(logits - m)                                               # (H, N, N)
    rowsum = jnp.sum(p, axis=-1, keepdims=True)                           # (H, N, 1)

    # ---- attn @ V with un-normalized probs, then scale the small context ----
    dn_av = (((2,), (1,)), ((0,), (0,)))    # 'hqk,hkd->hqd'
    ctx = jax.lax.dot_general(p.astype(jnp.bfloat16), v, dn_av,
                              preferred_element_type=jnp.float32)         # (H, N, hd)
    ctx = ctx * pl.reciprocal(rowsum, approx=True)

    # ---- fused output projection: lane-dense (N, D) context, ONE depth-32 push ----
    ctx_cat = jnp.concatenate([ctx[h] for h in range(H)], axis=1).astype(jnp.bfloat16)  # (N, D)
    attn_out = jnp.dot(ctx_cat, wo, preferred_element_type=jnp.float32) + bo            # (N, D)

    # ---- residual + LayerNorm 1 (f32) ----
    x1 = x + attn_out
    mu1 = jnp.mean(x1, axis=-1, keepdims=True)
    xc1 = x1 - mu1
    var1 = jnp.mean(xc1 * xc1, axis=-1, keepdims=True)
    x1n = xc1 * jax.lax.rsqrt(var1 + LN_EPS) * g1 + be1

    # ---- MLP: Linear -> (Dropout p=0) -> ReLU -> Linear ----
    h = jnp.dot(x1n.astype(jnp.bfloat16), w1, preferred_element_type=jnp.float32) + b1
    h = jnp.maximum(h, 0.0)
    mlp = jnp.dot(h.astype(jnp.bfloat16), w2, preferred_element_type=jnp.float32) + b2

    # ---- residual + LayerNorm 2 (f32) ----
    x2 = x1n + mlp
    mu2 = jnp.mean(x2, axis=-1, keepdims=True)
    xc2 = x2 - mu2
    var2 = jnp.mean(xc2 * xc2, axis=-1, keepdims=True)
    out_ref[...] = (xc2 * jax.lax.rsqrt(var2 + LN_EPS) * g2 + be2).astype(out_ref.dtype)


# --------------------------------- wrapper -------------------------------------
def _encoder_block(x, kp):
    B, S, D = x.shape
    N = B * S
    x_flat = x.reshape(N, D)
    kernel = functools.partial(encoder_block_kernel,
                               num_heads=NUM_HEADS, seq_len=S, dim_ff=DIM_FF)
    out_flat = pl.pallas_call(
        kernel,
        out_shape=jax.ShapeDtypeStruct((N, D), jnp.float32),
        in_specs=[
            pl.BlockSpec((N, D), lambda: (0, 0)),              # x
            pl.BlockSpec(kp["wslab"].shape, lambda: (0, 0)),   # packed bf16 weights
            pl.BlockSpec(kp["vec"].shape, lambda: (0, 0)),     # packed f32 biases / LN params
        ],
        out_specs=pl.BlockSpec((N, D), lambda: (0, 0)),
        # TODO(synk): for large batch, tile rows with a 1-D grid of (Bt*S, D) blocks,
        # dimension_semantics=("parallel",) (engages both TCs on v7x) and an explicit
        # pltpu.CompilerParams(vmem_limit_bytes=...) sized for v7x's 64 MiB VMEM
        # (the f32 logits grow as H*(Bt*S)^2).  At B=2, S=8 one block is fastest.
    )(x_flat, kp["wslab"], kp["vec"])
    return out_flat.reshape(B, S, D)


encoder_block = jax.jit(_encoder_block)


# ------------------------- parameters (PyTorch layout) --------------------------
def xavier_uniform(key, fan_out, fan_in):
    limit = math.sqrt(6.0 / (fan_in + fan_out))
    return jax.random.uniform(key, (fan_out, fan_in), jnp.float32, -limit, limit)


def init_params(key):
    """Parameters following the PyTorch module layout, pre-transposed to (in, out)."""
    ks = jax.random.split(key, 10)
    wqkv = xavier_uniform(ks[0], 3 * INPUT_DIM, INPUT_DIM).T          # (D, 3E)
    wo = xavier_uniform(ks[1], INPUT_DIM, INPUT_DIM).T                # (E, E)
    w1 = xavier_uniform(ks[2], DIM_FF, INPUT_DIM).T                   # (D, FF)
    w2 = xavier_uniform(ks[3], INPUT_DIM, DIM_FF).T                   # (FF, D)
    # PyTorch zero-inits attention biases; we use small non-zero values so the
    # bias / LN code paths in the kernel are actually exercised by the check.
    return {
        "wqkv": wqkv, "bqkv": 0.1 * jax.random.normal(ks[4], (3 * INPUT_DIM,), jnp.float32),
        "wo": wo, "bo": 0.1 * jax.random.normal(ks[5], (INPUT_DIM,), jnp.float32),
        "w1": w1, "b1": 0.1 * jax.random.normal(ks[6], (DIM_FF,), jnp.float32),
        "w2": w2, "b2": 0.1 * jax.random.normal(ks[7], (INPUT_DIM,), jnp.float32),
        "gamma1": 1.0 + 0.1 * jax.random.normal(ks[8], (INPUT_DIM,), jnp.float32),
        "beta1": 0.1 * jax.random.normal(ks[9], (INPUT_DIM,), jnp.float32),
        "gamma2": jnp.ones((INPUT_DIM,), jnp.float32),
        "beta2": jnp.zeros((INPUT_DIM,), jnp.float32),
    }


def prepare_kernel_params(p):
    """Convert PyTorch-layout params into the kernel's fused / packed layout.

    NOTE on QKV ordering: the spec's custom MultiheadAttention reshapes the
    qkv_proj output to (B, S, H, 3*head_dim), i.e. columns are interleaved per
    head as [q_h | k_h | v_h].  Here they are regrouped as [Q(all heads,
    head-major) | K | V] so the kernel's static per-head lane slices line up,
    and 1/sqrt(head_dim) is folded into Wq / bq (zero runtime cost).
    """
    D, H, hd, FF = INPUT_DIM, NUM_HEADS, HEAD_DIM, DIM_FF
    scale = 1.0 / math.sqrt(hd)

    w4 = p["wqkv"].reshape(D, H, 3, hd)                       # (D, H, {q,k,v}, hd)
    wq = (w4[:, :, 0, :] * scale).reshape(D, D)               # head-major columns
    wk = w4[:, :, 1, :].reshape(D, D)
    wv = w4[:, :, 2, :].reshape(D, D)
    wqkv_fused = jnp.concatenate([wq, wk, wv], axis=1)        # (D, 3D) = (32, 96)

    b4 = p["bqkv"].reshape(H, 3, hd)
    bqkv_fused = jnp.concatenate([(b4[:, 0, :] * scale).reshape(D),
                                  b4[:, 1, :].reshape(D),
                                  b4[:, 2, :].reshape(D)], axis=0)     # (96,)

    def pad_lanes(w):
        return jnp.pad(w, ((0, 0), (0, LANES - w.shape[1])))

    # One bf16 weight slab (row offsets are multiples of 16 -> aligned bf16 tiles):
    #   rows   0: 32  wqkv (96 -> 128 lanes)
    #   rows  32: 64  wo
    #   rows  64: 96  w1
    #   rows  96:160  w2
    wslab = jnp.concatenate([pad_lanes(wqkv_fused), pad_lanes(p["wo"]),
                             pad_lanes(p["w1"]), pad_lanes(p["w2"])],
                            axis=0).astype(jnp.bfloat16)               # (160, 128)

    def pad_vec(v):
        return jnp.pad(v.astype(jnp.float32), (0, LANES - v.shape[0]))

    vec = jnp.stack([pad_vec(bqkv_fused), pad_vec(p["bo"]), pad_vec(p["b1"]), pad_vec(p["b2"]),
                     pad_vec(p["gamma1"]), pad_vec(p["beta1"]),
                     pad_vec(p["gamma2"]), pad_vec(p["beta2"])], axis=0)  # (8, 128)

    return {"wslab": wslab, "vec": vec}


# ----------------------------- pure-JAX reference --------------------------------
def encoder_block_ref(x, p):
    B, S, D = x.shape
    H, hd = NUM_HEADS, HEAD_DIM
    qkv = x @ p["wqkv"] + p["bqkv"]                                   # (B, S, 3E)
    qkv = qkv.reshape(B, S, H, 3 * hd).transpose(0, 2, 1, 3)          # (B, H, S, 3hd)
    q, k, v = jnp.split(qkv, 3, axis=-1)
    logits = jnp.einsum("bhqd,bhkd->bhqk", q, k) / math.sqrt(hd)
    attn = jax.nn.softmax(logits, axis=-1)
    vals = jnp.einsum("bhqk,bhkd->bhqd", attn, v).transpose(0, 2, 1, 3).reshape(B, S, D)
    attn_out = vals @ p["wo"] + p["bo"]

    def ln(y, g, b):
        mu = y.mean(-1, keepdims=True)
        var = ((y - mu) ** 2).mean(-1, keepdims=True)
        return (y - mu) * jax.lax.rsqrt(var + LN_EPS) * g + b

    x1 = ln(x + attn_out, p["gamma1"], p["beta1"])
    mlp = jnp.maximum(x1 @ p["w1"] + p["b1"], 0.0) @ p["w2"] + p["b2"]
    return ln(x1 + mlp, p["gamma2"], p["beta2"])


# ------------------------------------ main ---------------------------------------
if __name__ == "__main__":
    key = jax.random.PRNGKey(0)
    kx, kp_key = jax.random.split(key)
    x = jax.random.normal(kx, (BATCH, SEQ, INPUT_DIM), jnp.float32)
    params = init_params(kp_key)
    kernel_params = prepare_kernel_params(params)

    out = jax.block_until_ready(encoder_block(x, kernel_params))
    ref = encoder_block_ref(x, params)

    assert out.shape == (BATCH, SEQ, INPUT_DIM)
    err = float(jnp.max(jnp.abs(out - ref)))
    # bf16 MXU operands vs. f32 reference -> loosened tolerance (per review).
    assert err < 5e-2, f"max abs err {err}"
    print("KERNEL_OK")
</pallas_src>

<mosaic_0001>
module attributes {stable_mosaic.version = 11 : i64} {
  func.func @encoder_block_kernel(%arg0: memref<16x32xf32, #tpu.memory_space<vmem>>, %arg1: memref<160x128xbf16, #tpu.memory_space<vmem>>, %arg2: memref<8x128xf32, #tpu.memory_space<vmem>>, %arg3: memref<16x32xf32, #tpu.memory_space<vmem>>) attributes {dimension_semantics = [], scalar_prefetch = 0 : i64, scratch_operands = 0 : i64, tpu.core_type = #tpu.core_type<tc>} {
    %c0 = arith.constant 0 : index
    %c0_0 = arith.constant 0 : index
    %0 = vector.load %arg1[%c0, %c0_0] : memref<160x128xbf16, #tpu.memory_space<vmem>>, vector<32x128xbf16>
    %c32 = arith.constant 32 : index
    %c0_1 = arith.constant 0 : index
    %1 = vector.load %arg1[%c32, %c0_1] : memref<160x128xbf16, #tpu.memory_space<vmem>>, vector<32x32xbf16>
    %c64 = arith.constant 64 : index
    %c0_2 = arith.constant 0 : index
    %2 = vector.load %arg1[%c64, %c0_2] : memref<160x128xbf16, #tpu.memory_space<vmem>>, vector<32x64xbf16>
    %c96 = arith.constant 96 : index
    %c0_3 = arith.constant 0 : index
    %3 = vector.load %arg1[%c96, %c0_3] : memref<160x128xbf16, #tpu.memory_space<vmem>>, vector<64x32xbf16>
    %c0_4 = arith.constant 0 : index
    %c0_5 = arith.constant 0 : index
    %4 = vector.load %arg2[%c0_4, %c0_5] : memref<8x128xf32, #tpu.memory_space<vmem>>, vector<8x128xf32>
    %5 = vector.extract_strided_slice %4 {offsets = [0, 0], sizes = [1, 128], strides = [1, 1]} : vector<8x128xf32> to vector<1x128xf32>
    %6 = vector.shape_cast %5 : vector<1x128xf32> to vector<128xf32>
    %7 = vector.extract_strided_slice %4 {offsets = [1, 0], sizes = [1, 32], strides = [1, 1]} : vector<8x128xf32> to vector<1x32xf32>
    %8 = vector.shape_cast %7 : vector<1x32xf32> to vector<32xf32>
    %9 = vector.extract_strided_slice %4 {offsets = [2, 0], sizes = [1, 64], strides = [1, 1]} : vector<8x128xf32> to vector<1x64xf32>
    %10 = vector.shape_cast %9 : vector<1x64xf32> to vector<64xf32>
    %11 = vector.extract_strided_slice %4 {offsets = [3, 0], sizes = [1, 32], strides = [1, 1]} : vector<8x128xf32> to vector<1x32xf32>
    %12 = vector.shape_cast %11 : vector<1x32xf32> to vector<32xf32>
    %13 = vector.extract_strided_slice %4 {offsets = [4, 0], sizes = [1, 32], strides = [1, 1]} : vector<8x128xf32> to vector<1x32xf32>
    %14 = vector.shape_cast %13 : vector<1x32xf32> to vector<32xf32>
    %15 = vector.extract_strided_slice %4 {offsets = [5, 0], sizes = [1, 32], strides = [1, 1]} : vector<8x128xf32> to vector<1x32xf32>
    %16 = vector.shape_cast %15 : vector<1x32xf32> to vector<32xf32>
    %17 = vector.extract_strided_slice %4 {offsets = [6, 0], sizes = [1, 32], strides = [1, 1]} : vector<8x128xf32> to vector<1x32xf32>
    %18 = vector.shape_cast %17 : vector<1x32xf32> to vector<32xf32>
    %19 = vector.extract_strided_slice %4 {offsets = [7, 0], sizes = [1, 32], strides = [1, 1]} : vector<8x128xf32> to vector<1x32xf32>
    %20 = vector.shape_cast %19 : vector<1x32xf32> to vector<32xf32>
    %c0_6 = arith.constant 0 : index
    %c0_7 = arith.constant 0 : index
    %21 = vector.load %arg0[%c0_6, %c0_7] : memref<16x32xf32, #tpu.memory_space<vmem>>, vector<16x32xf32>
    %22 = arith.truncf %21 : vector<16x32xf32> to vector<16x32xbf16>
    %cst = arith.constant dense<0.000000e+00> : vector<16x128xf32>
    %23 = tpu.matmul %22, %0, %cst {dimension_numbers = #tpu.dot_dimension_numbers<[1], [0], [0], [1], [0, 0, 1, 1], [], []>} : vector<16x32xbf16>, vector<32x128xbf16>, vector<16x128xf32> -> vector<16x128xf32>
    %24 = vector.shape_cast %6 : vector<128xf32> to vector<1x128xf32>
    %25 = vector.broadcast %24 : vector<1x128xf32> to vector<16x128xf32>
    %26 = arith.addf %23, %25 : vector<16x128xf32>
    %27 = arith.truncf %26 : vector<16x128xf32> to vector<16x128xbf16>
    %28 = vector.extract_strided_slice %27 {offsets = [0, 0], sizes = [16, 8], strides = [1, 1]} : vector<16x128xbf16> to vector<16x8xbf16>
    %29 = vector.extract_strided_slice %27 {offsets = [0, 8], sizes = [16, 8], strides = [1, 1]} : vector<16x128xbf16> to vector<16x8xbf16>
    %30 = vector.extract_strided_slice %27 {offsets = [0, 16], sizes = [16, 8], strides = [1, 1]} : vector<16x128xbf16> to vector<16x8xbf16>
    %31 = vector.extract_strided_slice %27 {offsets = [0, 24], sizes = [16, 8], strides = [1, 1]} : vector<16x128xbf16> to vector<16x8xbf16>
    %32 = vector.shape_cast %28 : vector<16x8xbf16> to vector<1x16x8xbf16>
    %33 = vector.shape_cast %29 : vector<16x8xbf16> to vector<1x16x8xbf16>
    %34 = vector.shape_cast %30 : vector<16x8xbf16> to vector<1x16x8xbf16>
    %35 = vector.shape_cast %31 : vector<16x8xbf16> to vector<1x16x8xbf16>
    %36 = tpu.concatenate %32, %33, %34, %35 in 0 : vector<1x16x8xbf16>, vector<1x16x8xbf16>, vector<1x16x8xbf16>, vector<1x16x8xbf16> -> vector<4x16x8xbf16>
    %37 = vector.extract_strided_slice %27 {offsets = [0, 32], sizes = [16, 8], strides = [1, 1]} : vector<16x128xbf16> to vector<16x8xbf16>
    %38 = vector.extract_strided_slice %27 {offsets = [0, 40], sizes = [16, 8], strides = [1, 1]} : vector<16x128xbf16> to vector<16x8xbf16>
    %39 = vector.extract_strided_slice %27 {offsets = [0, 48], sizes = [16, 8], strides = [1, 1]} : vector<16x128xbf16> to vector<16x8xbf16>
    %40 = vector.extract_strided_slice %27 {offsets = [0, 56], sizes = [16, 8], strides = [1, 1]} : vector<16x128xbf16> to vector<16x8xbf16>
    %41 = vector.shape_cast %37 : vector<16x8xbf16> to vector<1x16x8xbf16>
    %42 = vector.shape_cast %38 : vector<16x8xbf16> to vector<1x16x8xbf16>
    %43 = vector.shape_cast %39 : vector<16x8xbf16> to vector<1x16x8xbf16>
    %44 = vector.shape_cast %40 : vector<16x8xbf16> to vector<1x16x8xbf16>
    %45 = tpu.concatenate %41, %42, %43, %44 in 0 : vector<1x16x8xbf16>, vector<1x16x8xbf16>, vector<1x16x8xbf16>, vector<1x16x8xbf16> -> vector<4x16x8xbf16>
    %46 = vector.extract_strided_slice %27 {offsets = [0, 64], sizes = [16, 8], strides = [1, 1]} : vector<16x128xbf16> to vector<16x8xbf16>
    %47 = vector.extract_strided_slice %27 {offsets = [0, 72], sizes = [16, 8], strides = [1, 1]} : vector<16x128xbf16> to vector<16x8xbf16>
    %48 = vector.extract_strided_slice %27 {offsets = [0, 80], sizes = [16, 8], strides = [1, 1]} : vector<16x128xbf16> to vector<16x8xbf16>
    %49 = vector.extract_strided_slice %27 {offsets = [0, 88], sizes = [16, 8], strides = [1, 1]} : vector<16x128xbf16> to vector<16x8xbf16>
    %50 = vector.shape_cast %46 : vector<16x8xbf16> to vector<1x16x8xbf16>
    %51 = vector.shape_cast %47 : vector<16x8xbf16> to vector<1x16x8xbf16>
    %52 = vector.shape_cast %48 : vector<16x8xbf16> to vector<1x16x8xbf16>
    %53 = vector.shape_cast %49 : vector<16x8xbf16> to vector<1x16x8xbf16>
    %54 = tpu.concatenate %50, %51, %52, %53 in 0 : vector<1x16x8xbf16>, vector<1x16x8xbf16>, vector<1x16x8xbf16>, vector<1x16x8xbf16> -> vector<4x16x8xbf16>
    %cst_8 = arith.constant dense<0.000000e+00> : vector<4x16x16xf32>
    %55 = tpu.matmul %36, %45, %cst_8 {dimension_numbers = #tpu.dot_dimension_numbers<[2], [2], [1], [1], [0, 0, 0, 1, 1, 1], [0], [0]>} : vector<4x16x8xbf16>, vector<4x16x8xbf16>, vector<4x16x16xf32> -> vector<4x16x16xf32>
    %56 = tpu.iota {dimensions = array<i32: 0>} : vector<16x16xi32>
    %57 = tpu.iota {dimensions = array<i32: 1>} : vector<16x16xi32>
    %c3_i32 = arith.constant 3 : i32
    %58 = vector.broadcast %c3_i32 : i32 to vector<16x16xi32>
    %59 = arith.shrsi %56, %58 : vector<16x16xi32>
    %c3_i32_9 = arith.constant 3 : i32
    %60 = vector.broadcast %c3_i32_9 : i32 to vector<16x16xi32>
    %61 = arith.shrsi %57, %60 : vector<16x16xi32>
    %62 = arith.cmpi eq, %59, %61 : vector<16x16xi32>
    %cst_10 = arith.constant 0.000000e+00 : f32
    %cst_11 = arith.constant -1.000000e+30 : f32
    %63 = vector.broadcast %cst_10 : f32 to vector<16x16xf32>
    %64 = vector.broadcast %cst_11 : f32 to vector<16x16xf32>
    %65 = arith.select %62, %63, %64 : vector<16x16xi1>, vector<16x16xf32>
    %66 = vector.shape_cast %65 : vector<16x16xf32> to vector<1x16x16xf32>
    %67 = vector.broadcast %66 : vector<1x16x16xf32> to vector<4x16x16xf32>
    %68 = arith.addf %55, %67 : vector<4x16x16xf32>
    %cst_12 = arith.constant dense<0xFF800000> : vector<4x16xf32>
    %69 = vector.multi_reduction <maximumf>, %68, %cst_12 [2] : vector<4x16x16xf32> to vector<4x16xf32>
    %70 = vector.shape_cast %69 : vector<4x16xf32> to vector<4x16x1xf32>
    %71 = vector.broadcast %70 : vector<4x16x1xf32> to vector<4x16x16xf32>
    %72 = arith.subf %68, %71 : vector<4x16x16xf32>
    %73 = math.exp %72 : vector<4x16x16xf32>
    %cst_13 = arith.constant dense<0.000000e+00> : vector<4x16xf32>
    %74 = vector.multi_reduction <add>, %73, %cst_13 [2] : vector<4x16x16xf32> to vector<4x16xf32>
    %75 = vector.shape_cast %74 : vector<4x16xf32> to vector<4x16x1xf32>
    %76 = arith.truncf %73 : vector<4x16x16xf32> to vector<4x16x16xbf16>
    %cst_14 = arith.constant dense<0.000000e+00> : vector<4x16x8xf32>
    %77 = tpu.matmul %76, %54, %cst_14 {dimension_numbers = #tpu.dot_dimension_numbers<[2], [1], [1], [2], [0, 0, 0, 1, 1, 2], [0], [0]>} : vector<4x16x16xbf16>, vector<4x16x8xbf16>, vector<4x16x8xf32> -> vector<4x16x8xf32>
    %78 = tpu.reciprocal %75 {approx = true} : vector<4x16x1xf32> -> vector<4x16x1xf32>
    %79 = vector.broadcast %78 : vector<4x16x1xf32> to vector<4x16x8xf32>
    %80 = arith.mulf %77, %79 : vector<4x16x8xf32>
    %81 = vector.extract_strided_slice %80 {offsets = [0, 0, 0], sizes = [1, 16, 8], strides = [1, 1, 1]} : vector<4x16x8xf32> to vector<1x16x8xf32>
    %82 = vector.shape_cast %81 : vector<1x16x8xf32> to vector<16x8xf32>
    %83 = vector.extract_strided_slice %80 {offsets = [1, 0, 0], sizes = [1, 16, 8], strides = [1, 1, 1]} : vector<4x16x8xf32> to vector<1x16x8xf32>
    %84 = vector.shape_cast %83 : vector<1x16x8xf32> to vector<16x8xf32>
    %85 = vector.extract_strided_slice %80 {offsets = [2, 0, 0], sizes = [1, 16, 8], strides = [1, 1, 1]} : vector<4x16x8xf32> to vector<1x16x8xf32>
    %86 = vector.shape_cast %85 : vector<1x16x8xf32> to vector<16x8xf32>
    %87 = vector.extract_strided_slice %80 {offsets = [3, 0, 0], sizes = [1, 16, 8], strides = [1, 1, 1]} : vector<4x16x8xf32> to vector<1x16x8xf32>
    %88 = vector.shape_cast %87 : vector<1x16x8xf32> to vector<16x8xf32>
    %89 = tpu.concatenate %82, %84, %86, %88 in 1 : vector<16x8xf32>, vector<16x8xf32>, vector<16x8xf32>, vector<16x8xf32> -> vector<16x32xf32>
    %90 = arith.truncf %89 : vector<16x32xf32> to vector<16x32xbf16>
    %cst_15 = arith.constant dense<0.000000e+00> : vector<16x32xf32>
    %91 = tpu.matmul %90, %1, %cst_15 {dimension_numbers = #tpu.dot_dimension_numbers<[1], [0], [0], [1], [0, 0, 1, 1], [], []>} : vector<16x32xbf16>, vector<32x32xbf16>, vector<16x32xf32> -> vector<16x32xf32>
    %92 = vector.shape_cast %8 : vector<32xf32> to vector<1x32xf32>
    %93 = vector.broadcast %92 : vector<1x32xf32> to vector<16x32xf32>
    %94 = arith.addf %91, %93 : vector<16x32xf32>
    %95 = arith.addf %21, %94 : vector<16x32xf32>
    %cst_16 = arith.constant dense<0.000000e+00> : vector<16xf32>
    %96 = vector.multi_reduction <add>, %95, %cst_16 [1] : vector<16x32xf32> to vector<16xf32>
    %97 = vector.shape_cast %96 : vector<16xf32> to vector<16x1xf32>
    %cst_17 = arith.constant 3.200000e+01 : f32
    %98 = vector.broadcast %cst_17 : f32 to vector<16x1xf32>
    %99 = arith.divf %97, %98 : vector<16x1xf32>
    %100 = vector.broadcast %99 : vector<16x1xf32> to vector<16x32xf32>
    %101 = arith.subf %95, %100 : vector<16x32xf32>
    %102 = arith.mulf %101, %101 : vector<16x32xf32>
    %cst_18 = arith.constant dense<0.000000e+00> : vector<16xf32>
    %103 = vector.multi_reduction <add>, %102, %cst_18 [1] : vector<16x32xf32> to vector<16xf32>
    %104 = vector.shape_cast %103 : vector<16xf32> to vector<16x1xf32>
    %cst_19 = arith.constant 3.200000e+01 : f32
    %105 = vector.broadcast %cst_19 : f32 to vector<16x1xf32>
    %106 = arith.divf %104, %105 : vector<16x1xf32>
    %cst_20 = arith.constant 9.99999974E-6 : f32
    %107 = vector.broadcast %cst_20 : f32 to vector<16x1xf32>
    %108 = arith.addf %106, %107 : vector<16x1xf32>
    %109 = math.rsqrt %108 : vector<16x1xf32>
    %110 = vector.broadcast %109 : vector<16x1xf32> to vector<16x32xf32>
    %111 = arith.mulf %101, %110 : vector<16x32xf32>
    %112 = vector.shape_cast %14 : vector<32xf32> to vector<1x32xf32>
    %113 = vector.broadcast %112 : vector<1x32xf32> to vector<16x32xf32>
    %114 = arith.mulf %111, %113 : vector<16x32xf32>
    %115 = vector.shape_cast %16 : vector<32xf32> to vector<1x32xf32>
    %116 = vector.broadcast %115 : vector<1x32xf32> to vector<16x32xf32>
    %117 = arith.addf %114, %116 : vector<16x32xf32>
    %118 = arith.truncf %117 : vector<16x32xf32> to vector<16x32xbf16>
    %cst_21 = arith.constant dense<0.000000e+00> : vector<16x64xf32>
    %119 = tpu.matmul %118, %2, %cst_21 {dimension_numbers = #tpu.dot_dimension_numbers<[1], [0], [0], [1], [0, 0, 1, 1], [], []>} : vector<16x32xbf16>, vector<32x64xbf16>, vector<16x64xf32> -> vector<16x64xf32>
    %120 = vector.shape_cast %10 : vector<64xf32> to vector<1x64xf32>
    %121 = vector.broadcast %120 : vector<1x64xf32> to vector<16x64xf32>
    %122 = arith.addf %119, %121 : vector<16x64xf32>
    %cst_22 = arith.constant 0.000000e+00 : f32
    %123 = vector.broadcast %cst_22 : f32 to vector<16x64xf32>
    %124 = arith.maximumf %122, %123 : vector<16x64xf32>
    %125 = arith.truncf %124 : vector<16x64xf32> to vector<16x64xbf16>
    %cst_23 = arith.constant dense<0.000000e+00> : vector<16x32xf32>
    %126 = tpu.matmul %125, %3, %cst_23 {dimension_numbers = #tpu.dot_dimension_numbers<[1], [0], [0], [1], [0, 0, 1, 1], [], []>} : vector<16x64xbf16>, vector<64x32xbf16>, vector<16x32xf32> -> vector<16x32xf32>
    %127 = vector.shape_cast %12 : vector<32xf32> to vector<1x32xf32>
    %128 = vector.broadcast %127 : vector<1x32xf32> to vector<16x32xf32>
    %129 = arith.addf %126, %128 : vector<16x32xf32>
    %130 = arith.addf %117, %129 : vector<16x32xf32>
    %cst_24 = arith.constant dense<0.000000e+00> : vector<16xf32>
    %131 = vector.multi_reduction <add>, %130, %cst_24 [1] : vector<16x32xf32> to vector<16xf32>
    %132 = vector.shape_cast %131 : vector<16xf32> to vector<16x1xf32>
    %cst_25 = arith.constant 3.200000e+01 : f32
    %133 = vector.broadcast %cst_25 : f32 to vector<16x1xf32>
    %134 = arith.divf %132, %133 : vector<16x1xf32>
    %135 = vector.broadcast %134 : vector<16x1xf32> to vector<16x32xf32>
    %136 = arith.subf %130, %135 : vector<16x32xf32>
    %137 = arith.mulf %136, %136 : vector<16x32xf32>
    %cst_26 = arith.constant dense<0.000000e+00> : vector<16xf32>
    %138 = vector.multi_reduction <add>, %137, %cst_26 [1] : vector<16x32xf32> to vector<16xf32>
    %139 = vector.shape_cast %138 : vector<16xf32> to vector<16x1xf32>
    %cst_27 = arith.constant 3.200000e+01 : f32
    %140 = vector.broadcast %cst_27 : f32 to vector<16x1xf32>
    %141 = arith.divf %139, %140 : vector<16x1xf32>
    %cst_28 = arith.constant 9.99999974E-6 : f32
    %142 = vector.broadcast %cst_28 : f32 to vector<16x1xf32>
    %143 = arith.addf %141, %142 : vector<16x1xf32>
    %144 = math.rsqrt %143 : vector<16x1xf32>
    %145 = vector.broadcast %144 : vector<16x1xf32> to vector<16x32xf32>
    %146 = arith.mulf %136, %145 : vector<16x32xf32>
    %147 = vector.shape_cast %18 : vector<32xf32> to vector<1x32xf32>
    %148 = vector.broadcast %147 : vector<1x32xf32> to vector<16x32xf32>
    %149 = arith.mulf %146, %148 : vector<16x32xf32>
    %150 = vector.shape_cast %20 : vector<32xf32> to vector<1x32xf32>
    %151 = vector.broadcast %150 : vector<1x32xf32> to vector<16x32xf32>
    %152 = arith.addf %149, %151 : vector<16x32xf32>
    %c0_29 = arith.constant 0 : index
    %c0_30 = arith.constant 0 : index
    %153 = vector.load %arg3[%c0_29, %c0_30] : memref<16x32xf32, #tpu.memory_space<vmem>>, vector<16x32xf32>
    tpu.vector_store %arg3[%c0_29, %c0_30], %152 {strides = array<i32>} : memref<16x32xf32, #tpu.memory_space<vmem>>, vector<16x32xf32>,
    return
  }
}

</mosaic_0001>

<llo_original>
// kernel: _encoder_block.1
$region0: #{_encoder_block.1}
  #allocation0 [shape = 'u32[]', space=smem, size = 0x4, offset = 0x4, fixed_abs, tag = 'smem constant byte address 0x4 - core index']
  #allocation1 [shape = 'u32[144,128]{1,0:T(1,128)}', space=vmem, size = 0x12000, scoped, tag = 'internal scratch']
  %s0 = inlined_call_operand.hbm [shape: f32[16,32], index: 0, kind: input, shape index: {}]
  %s1 = inlined_call_operand.hbm [shape: bf16[160,128], index: 1, kind: input, shape index: {}]
  %s2 = inlined_call_operand.hbm [shape: f32[8,128], index: 2, kind: input, shape index: {}]
  %s3 = inlined_call_operand.hbm [shape: f32[16,32], index: 3, kind: output, shape index: {}]
  %s4 = sld [smem:[#allocation0]]
  $region34: #{_encoder_block.1} parent=0
    _
  %s6 = ssub.s32 1, %s4
  %s7 = scalar_select 0, %s6, %s4
  $region1: #{_encoder_block.1} parent=0
    #allocation2 [shape = 'u8[8192]{0}', space=vmem, size = 0x2000, scoped, tag = 'input window, operand 0, single buffered']
    #allocation3 [shape = 's32[1]{0}', space=sflag, size = 0x4, scoped, tag = 'scoped memory for _encoder_block.1']
    #allocation4 [shape = 's32[1]{0}', space=sflag, size = 0x4, scoped, tag = 'scoped memory for _encoder_block.1']
    #allocation5 [shape = 'u8[40960]{0}', space=vmem, size = 0xa000, scoped, tag = 'input window, operand 1, single buffered']
    #allocation6 [shape = 's32[1]{0}', space=sflag, size = 0x4, scoped, tag = 'scoped memory for _encoder_block.1']
    #allocation7 [shape = 'u8[4096]{0}', space=vmem, size = 0x1000, scoped, tag = 'input window, operand 2, single buffered']
    #allocation8 [shape = 'u8[8192]{0}', space=vmem, size = 0x2000, scoped, tag = 'output window, operand 0, single buffered']
    %8 = vsyncpa [#allocation3], 0
    %9 = vsyncpa [#allocation6], 0
    %10 = vsyncpa [#allocation4], 0
    // Predicated region
    $region2: #{_encoder_block.1} parent=1 // pred_check
      _
    $region3: #{_encoder_block.1} parent=1 // pred_check_branch
      %12 = sbr.rel (0) target = $region5
    $region4: #{_encoder_block.1} parent=1 // pred_region
      %s14 = ssub.s32 256, 256
      %15 = vsyncadd [#allocation3], %s14
      %s16 = sshll.u32 [#allocation2], 4
      %s17 = int_to_ptr.vmem [resolvable:$true] %s16
      %22 = dma.hbm_to_vmem [thread:$0]  %s0, 256, %s17, [#allocation3], 128, 128, 8
    $region5: #{_encoder_block.1} parent=1 // pred_fallthru
      _
    // Predicated region
    $region6: #{_encoder_block.1} parent=1 // pred_check
      _
    $region7: #{_encoder_block.1} parent=1 // pred_check_branch
      %24 = sbr.rel (0) target = $region9
    $region8: #{_encoder_block.1} parent=1 // pred_region
      %s26 = ssub.s32 1280, 1280
      %27 = vsyncadd [#allocation6], %s26
      %s28 = sshll.u32 [#allocation5], 4
      %s29 = int_to_ptr.vmem [resolvable:$true] %s28
      %34 = dma.hbm_to_vmem [thread:$0]  %s1, 1280, %s29, [#allocation6], 64, 64, 4
    $region9: #{_encoder_block.1} parent=1 // pred_fallthru
      _
    // Predicated region
    $region10: #{_encoder_block.1} parent=1 // pred_check
      _
    $region11: #{_encoder_block.1} parent=1 // pred_check_branch
      %36 = sbr.rel (0) target = $region13
    $region12: #{_encoder_block.1} parent=1 // pred_region
      %s38 = ssub.s32 128, 128
      %39 = vsyncadd [#allocation6], %s38
      %s41 = sshll.u32 [#allocation7], 4
      %s42 = int_to_ptr.vmem [resolvable:$true] %s41
      %44 = dma.hbm_to_vmem [thread:$0]  %s2, 128, %s42, [#allocation6]
    $region13: #{_encoder_block.1} parent=1 // pred_fallthru
      _
    // Predicated region
    $region14: #{_encoder_block.1} parent=1 // pred_check
      _
    $region15: #{_encoder_block.1} parent=1 // pred_check_branch
      %46 = sbr.rel (0) target = $region17
    $region16: #{_encoder_block.1} parent=1 // pred_region
      %47 = dma.done [#allocation3], 256
    $region17: #{_encoder_block.1} parent=1 // pred_fallthru
      _
    // Predicated region
    $region18: #{_encoder_block.1} parent=1 // pred_check
      _
    $region19: #{_encoder_block.1} parent=1 // pred_check_branch
      %49 = sbr.rel (0) target = $region21
    $region20: #{_encoder_block.1} parent=1 // pred_region
      %50 = dma.done [#allocation6], 1280
    $region21: #{_encoder_block.1} parent=1 // pred_fallthru
      _
    // Predicated region
    $region22: #{_encoder_block.1} parent=1 // pred_check
      _
    $region23: #{_encoder_block.1} parent=1 // pred_check_branch
      %52 = sbr.rel (0) target = $region25
    $region24: #{_encoder_block.1} parent=1 // pred_region
      %53 = dma.done [#allocation6], 128
    $region25: #{_encoder_block.1} parent=1 // pred_fallthru
      _
    %v55 = vld [vmem:[#allocation5] sm:$0xf]
    %v56 = vld [vmem:[#allocation5 + $0x4] sm:$0xf]
    %v57 = vld [vmem:[#allocation5 + $0x8] sm:$0xf]
    %v58 = vld [vmem:[#allocation5 + $0xc] sm:$0xf]
    %v59 = vld [vmem:[#allocation5 + $0x10] sm:$0xf]
    %v60 = vld [vmem:[#allocation5 + $0x14] sm:$0xf]
    %v61 = vld [vmem:[#allocation5 + $0x18] sm:$0xf]
    %v62 = vld [vmem:[#allocation5 + $0x1c] sm:$0xf]
    %v63 = vld [vmem:[#allocation5 + $0x20] sm:$0xf]
    %v64 = vld [vmem:[#allocation5 + $0x24] sm:$0xf]
    %v65 = vld [vmem:[#allocation5 + $0x28] sm:$0xf]
    %v66 = vld [vmem:[#allocation5 + $0x2c] sm:$0xf]
    %v67 = vld [vmem:[#allocation5 + $0x30] sm:$0xf]
    %v68 = vld [vmem:[#allocation5 + $0x34] sm:$0xf]
    %v69 = vld [vmem:[#allocation5 + $0x38] sm:$0xf]
    %v70 = vld [vmem:[#allocation5 + $0x3c] sm:$0xf]
    %v71 = vld [vmem:[#allocation5 + $0x40] sm:$0xf]
    %v72 = vld [vmem:[#allocation5 + $0x44] sm:$0xf]
    %v73 = vld [vmem:[#allocation5 + $0x48] sm:$0xf]
    %v74 = vld [vmem:[#allocation5 + $0x4c] sm:$0xf]
    %v75 = vld [vmem:[#allocation7] sm:$0xff]
    %v76 = vld [vmem:[#allocation2] sm:$0xff]
    %v77 = vld [vmem:[#allocation2 + $0x8] sm:$0xff]
    %v78 = vpack.c.bf16 %v77, %v76
    %v79 = vlaneseq
    %v80 = vshrl.u32 %v79, 7
    %v81 = vsub.s32 0, %v80
    %v82 = vrot.slane %v75, %v81
    %v87 = vunpack.c.l.b16 %v55
    %v88 = vunpack.c.l.b16 %v56
    %v89 = vunpack.c.l.b16 %v57
    %v90 = vunpack.c.l.b16 %v58
    %v91 = vpack.c.b16 %v88, %v87
    %v92 = vpack.c.b16 %v90, %v89
    %vm95 = vcmask 261120
    %v97 = vsel %vm95, %v78, 0
    %99 = vmatprep.subr.bf16.mxu0 0
    %100 = vmatpush1.bf16.msra.mxu0 %v91
    %101 = vmatprep.subr.bf16.mxu0 0
    %102 = vmatpush1.bf16.msra.mxu0 %v92
    %103 = vmatprep.subr.bf16.mxu0 0
    %104 = vmatpush1.bf16.msra.mxu0 0
    %105 = vmatprep.subr.bf16.mxu0 0
    %106 = vmatpush1.bf16.msra.mxu0 0
    %107 = vmatprep.subr.bf16.mxu0 0
    %108 = vmatpush1.bf16.msra.mxu0 0
    %109 = vmatprep.subr.bf16.mxu0 0
    %110 = vmatpush1.bf16.msra.mxu0 0
    %111 = vmatprep.subr.bf16.mxu0 0
    %112 = vmatpush1.bf16.msra.mxu0 0
    %113 = vmatprep.subr.bf16.mxu0 0
    %114 = vmatpush1.bf16.msra.mxu0 0
    %115 = vmatprep.subr.bf16.mxu0 0
    %116 = vmatpush1.bf16.msra.mxu0 0
    %117 = vmatprep.subr.bf16.mxu0 0
    %118 = vmatpush1.bf16.msra.mxu0 0
    %119 = vmatprep.subr.bf16.mxu0 0
    %120 = vmatpush1.bf16.msra.mxu0 0
    %121 = vmatprep.subr.bf16.mxu0 0
    %122 = vmatpush1.bf16.msra.mxu0 0
    %123 = vmatprep.subr.bf16.mxu0 0
    %124 = vmatpush1.bf16.msra.mxu0 0
    %125 = vmatprep.subr.bf16.mxu0 0
    %126 = vmatpush1.bf16.msra.mxu0 0
    %127 = vmatprep.subr.bf16.mxu0 0
    %128 = vmatpush1.bf16.msra.mxu0 0
    %129 = vmatprep.subr.bf16.mxu0 0
    %130 = vmatpush1.bf16.msra.mxu0 0
    %131 = vmatprep.mubr.bf16.mxu0 0
    %132 = vmatmul.mubr.bf16.gmra.mrb[0].mxu0 %v97
    %v133 = vpop.f32.mrb[0].mxu0
    %v134 = vadd.f32 %v82, %v133
    %v135 = vpop.f32.mrb[0].mxu0
    %v136 = vpop.f32.mrb[0].mxu0
    %v137 = vadd.f32 %v82, %v136
    %v138 = vpop.f32.mrb[0].mxu0
    %139 = vdwg.mxu0
    %v140 = vpack.c.bf16 %v137, %v134
    %142 = vrot.lane.b32.xlu0 %v140, 120
    %v143 = vpop.permute.xlu0 %142
    %144 = vrot.lane.b32.xlu0 %v140, 112
    %v145 = vpop.permute.xlu0 %144
    %146 = vrot.lane.b32.xlu0 %v140, 104
    %v147 = vpop.permute.xlu0 %146
    %v148 = vlaneseq
    %v149 = vshrl.u32 %v148, 7
    %v150 = vadd.s32 %v149, 8
    %v151 = vlaneseq
    %v152 = vand.u32 %v151, 127
    %v153 = vshra.s32 %v149, 3
    %v154 = vshra.s32 %v150, 3
    %v155 = vshra.s32 %v152, 3
    %vm156 = vcmp.eq.s32.totalorder %v153, %v155
    %vm157 = vcmp.eq.s32.totalorder %v154, %v155
    %v158 = vsel %vm156, 0.0, -1e+30
    %v159 = vsel %vm157, 0.0, -1e+30
    %160 = vrot.lane.b32.xlu0 %v140, 96
    %v161 = vpop.permute.xlu0 %160
    %vm162 = vcmask 64512
    %v164 = vsel %vm162, %v140, 0
    %v167 = vsel %vm162, %v161, 0
    %169 = vmatprep.subr.bf16.mxu0 0
    %170 = vmatpush1.bf16.xpose.msra.mxu0 %v167
    %171 = vmatprep.subr.bf16.mxu0 0
    %172 = vmatpush1.bf16.xpose.msra.mxu0 0
    %173 = vmatprep.subr.bf16.mxu0 0
    %174 = vmatpush1.bf16.xpose.msra.mxu0 0
    %175 = vmatprep.subr.bf16.mxu0 0
    %176 = vmatpush1.bf16.xpose.msra.mxu0 0
    %177 = vmatprep.subr.bf16.mxu0 0
    %178 = vmatpush1.bf16.xpose.msra.mxu0 0
    %179 = vmatprep.subr.bf16.mxu0 0
    %180 = vmatpush1.bf16.xpose.msra.mxu0 0
    %181 = vmatprep.subr.bf16.mxu0 0
    %182 = vmatpush1.bf16.xpose.msra.mxu0 0
    %183 = vmatprep.subr.bf16.mxu0 0
    %184 = vmatpush1.bf16.xpose.msra.mxu0 0
    %185 = vmatprep.subr.bf16.mxu0 0
    %186 = vmatpush1.bf16.xpose.msra.mxu0 0
    %187 = vmatprep.subr.bf16.mxu0 0
    %188 = vmatpush1.bf16.xpose.msra.mxu0 0
    %189 = vmatprep.subr.bf16.mxu0 0
    %190 = vmatpush1.bf16.xpose.msra.mxu0 0
    %191 = vmatprep.subr.bf16.mxu0 0
    %192 = vmatpush1.bf16.xpose.msra.mxu0 0
    %193 = vmatprep.subr.bf16.mxu0 0
    %194 = vmatpush1.bf16.xpose.msra.mxu0 0
    %195 = vmatprep.subr.bf16.mxu0 0
    %196 = vmatpush1.bf16.xpose.msra.mxu0 0
    %197 = vmatprep.subr.bf16.mxu0 0
    %198 = vmatpush1.bf16.xpose.msra.mxu0 0
    %199 = vmatprep.subr.bf16.mxu0 0
    %200 = vmatpush1.bf16.xpose.msra.mxu0 0
    %201 = vmatprep.mubr.bf16.mxu0 0
    %202 = vmatmul.mubr.bf16.gmra.mrb[0].mxu0 %v164
    %v203 = vpop.f32.mrb[0].mxu0
    %v204 = vadd.f32 %v158, %v203
    %v205 = vpop.f32.mrb[0].mxu0
    %v206 = vpop.f32.mrb[0].mxu0
    %v207 = vadd.f32 %v159, %v206
    %v208 = vpop.f32.mrb[0].mxu0
    %209 = vdwg.mxu0
    %210 = vrot.lane.b32.xlu0 %v143, 96
    %v211 = vpop.permute.xlu0 %210
    %v213 = vsel %vm162, %v143, 0
    %v216 = vsel %vm162, %v211, 0
    %218 = vmatprep.subr.bf16.mxu0 0
    %219 = vmatpush1.bf16.xpose.msra.mxu0 %v216
    %220 = vmatprep.subr.bf16.mxu0 0
    %221 = vmatpush1.bf16.xpose.msra.mxu0 0
    %222 = vmatprep.subr.bf16.mxu0 0
    %223 = vmatpush1.bf16.xpose.msra.mxu0 0
    %224 = vmatprep.subr.bf16.mxu0 0
    %225 = vmatpush1.bf16.xpose.msra.mxu0 0
    %226 = vmatprep.subr.bf16.mxu0 0
    %227 = vmatpush1.bf16.xpose.msra.mxu0 0
    %228 = vmatprep.subr.bf16.mxu0 0
    %229 = vmatpush1.bf16.xpose.msra.mxu0 0
    %230 = vmatprep.subr.bf16.mxu0 0
    %231 = vmatpush1.bf16.xpose.msra.mxu0 0
    %232 = vmatprep.subr.bf16.mxu0 0
    %233 = vmatpush1.bf16.xpose.msra.mxu0 0
    %234 = vmatprep.subr.bf16.mxu0 0
    %235 = vmatpush1.bf16.xpose.msra.mxu0 0
    %236 = vmatprep.subr.bf16.mxu0 0
    %237 = vmatpush1.bf16.xpose.msra.mxu0 0
    %238 = vmatprep.subr.bf16.mxu0 0
    %239 = vmatpush1.bf16.xpose.msra.mxu0 0
    %240 = vmatprep.subr.bf16.mxu0 0
    %241 = vmatpush1.bf16.xpose.msra.mxu0 0
    %242 = vmatprep.subr.bf16.mxu0 0
    %243 = vmatpush1.bf16.xpose.msra.mxu0 0
    %244 = vmatprep.subr.bf16.mxu0 0
    %245 = vmatpush1.bf16.xpose.msra.mxu0 0
    %246 = vmatprep.subr.bf16.mxu0 0
    %247 = vmatpush1.bf16.xpose.msra.mxu0 0
    %248 = vmatprep.subr.bf16.mxu0 0
    %249 = vmatpush1.bf16.xpose.msra.mxu0 0
    %250 = vmatprep.mubr.bf16.mxu0 0
    %251 = vmatmul.mubr.bf16.gmra.mrb[0].mxu0 %v213
    %v252 = vpop.f32.mrb[0].mxu0
    %v253 = vadd.f32 %v158, %v252
    %v254 = vpop.f32.mrb[0].mxu0
    %v255 = vpop.f32.mrb[0].mxu0
    %v256 = vadd.f32 %v159, %v255
    %v257 = vpop.f32.mrb[0].mxu0
    %258 = vdwg.mxu0
    %259 = vrot.lane.b32.xlu0 %v145, 96
    %v260 = vpop.permute.xlu0 %259
    %v262 = vsel %vm162, %v145, 0
    %v265 = vsel %vm162, %v260, 0
    %267 = vmatprep.subr.bf16.mxu0 0
    %268 = vmatpush1.bf16.xpose.msra.mxu0 %v265
    %269 = vmatprep.subr.bf16.mxu0 0
    %270 = vmatpush1.bf16.xpose.msra.mxu0 0
    %271 = vmatprep.subr.bf16.mxu0 0
    %272 = vmatpush1.bf16.xpose.msra.mxu0 0
    %273 = vmatprep.subr.bf16.mxu0 0
    %274 = vmatpush1.bf16.xpose.msra.mxu0 0
    %275 = vmatprep.subr.bf16.mxu0 0
    %276 = vmatpush1.bf16.xpose.msra.mxu0 0
    %277 = vmatprep.subr.bf16.mxu0 0
    %278 = vmatpush1.bf16.xpose.msra.mxu0 0
    %279 = vmatprep.subr.bf16.mxu0 0
    %280 = vmatpush1.bf16.xpose.msra.mxu0 0
    %281 = vmatprep.subr.bf16.mxu0 0
    %282 = vmatpush1.bf16.xpose.msra.mxu0 0
    %283 = vmatprep.subr.bf16.mxu0 0
    %284 = vmatpush1.bf16.xpose.msra.mxu0 0
    %285 = vmatprep.subr.bf16.mxu0 0
    %286 = vmatpush1.bf16.xpose.msra.mxu0 0
    %287 = vmatprep.subr.bf16.mxu0 0
    %288 = vmatpush1.bf16.xpose.msra.mxu0 0
    %289 = vmatprep.subr.bf16.mxu0 0
    %290 = vmatpush1.bf16.xpose.msra.mxu0 0
    %291 = vmatprep.subr.bf16.mxu0 0
    %292 = vmatpush1.bf16.xpose.msra.mxu0 0
    %293 = vmatprep.subr.bf16.mxu0 0
    %294 = vmatpush1.bf16.xpose.msra.mxu0 0
    %295 = vmatprep.subr.bf16.mxu0 0
    %296 = vmatpush1.bf16.xpose.msra.mxu0 0
    %297 = vmatprep.subr.bf16.mxu0 0
    %298 = vmatpush1.bf16.xpose.msra.mxu0 0
    %299 = vmatprep.mubr.bf16.mxu0 0
    %300 = vmatmul.mubr.bf16.gmra.mrb[0].mxu0 %v262
    %v301 = vpop.f32.mrb[0].mxu0
    %v302 = vadd.f32 %v158, %v301
    %v303 = vpop.f32.mrb[0].mxu0
    %v304 = vpop.f32.mrb[0].mxu0
    %v305 = vadd.f32 %v159, %v304
    %v306 = vpop.f32.mrb[0].mxu0
    %307 = vdwg.mxu0
    %308 = vrot.lane.b32.xlu0 %v147, 96
    %v309 = vpop.permute.xlu0 %308
    %v311 = vsel %vm162, %v147, 0
    %v314 = vsel %vm162, %v309, 0
    %316 = vmatprep.subr.bf16.mxu0 0
    %317 = vmatpush1.bf16.xpose.msra.mxu0 %v314
    %318 = vmatprep.subr.bf16.mxu0 0
    %319 = vmatpush1.bf16.xpose.msra.mxu0 0
    %320 = vmatprep.subr.bf16.mxu0 0
    %321 = vmatpush1.bf16.xpose.msra.mxu0 0
    %322 = vmatprep.subr.bf16.mxu0 0
    %323 = vmatpush1.bf16.xpose.msra.mxu0 0
    %324 = vmatprep.subr.bf16.mxu0 0
    %325 = vmatpush1.bf16.xpose.msra.mxu0 0
    %326 = vmatprep.subr.bf16.mxu0 0
    %327 = vmatpush1.bf16.xpose.msra.mxu0 0
    %328 = vmatprep.subr.bf16.mxu0 0
    %329 = vmatpush1.bf16.xpose.msra.mxu0 0
    %330 = vmatprep.subr.bf16.mxu0 0
    %331 = vmatpush1.bf16.xpose.msra.mxu0 0
    %332 = vmatprep.subr.bf16.mxu0 0
    %333 = vmatpush1.bf16.xpose.msra.mxu0 0
    %334 = vmatprep.subr.bf16.mxu0 0
    %335 = vmatpush1.bf16.xpose.msra.mxu0 0
    %336 = vmatprep.subr.bf16.mxu0 0
    %337 = vmatpush1.bf16.xpose.msra.mxu0 0
    %338 = vmatprep.subr.bf16.mxu0 0
    %339 = vmatpush1.bf16.xpose.msra.mxu0 0
    %340 = vmatprep.subr.bf16.mxu0 0
    %341 = vmatpush1.bf16.xpose.msra.mxu0 0
    %342 = vmatprep.subr.bf16.mxu0 0
    %343 = vmatpush1.bf16.xpose.msra.mxu0 0
    %344 = vmatprep.subr.bf16.mxu0 0
    %345 = vmatpush1.bf16.xpose.msra.mxu0 0
    %346 = vmatprep.subr.bf16.mxu0 0
    %347 = vmatpush1.bf16.xpose.msra.mxu0 0
    %348 = vmatprep.mubr.bf16.mxu0 0
    %349 = vmatmul.mubr.bf16.gmra.mrb[0].mxu0 %v311
    %v350 = vpop.f32.mrb[0].mxu0
    %v351 = vadd.f32 %v158, %v350
    %v352 = vpop.f32.mrb[0].mxu0
    %v353 = vpop.f32.mrb[0].mxu0
    %v354 = vadd.f32 %v159, %v353
    %v355 = vpop.f32.mrb[0].mxu0
    %356 = vdwg.mxu0
    %vm357 = vcmask 130048
    %v358 = vsel %vm357, %v204, -inf
    %359 = vmax.xlane.f32.xlu0 %v358
    %v360 = vpop.xlane.xlu0 %359
    %v361 = vsel %vm357, %v207, -inf
    %362 = vmax.xlane.f32.xlu0 %v361
    %v363 = vpop.xlane.xlu0 %362
    %v364 = vsel %vm357, %v253, -inf
    %365 = vmax.xlane.f32.xlu0 %v364
    %v366 = vpop.xlane.xlu0 %365
    %v367 = vsel %vm357, %v256, -inf
    %368 = vmax.xlane.f32.xlu0 %v367
    %v369 = vpop.xlane.xlu0 %368
    %v370 = vsel %vm357, %v302, -inf
    %371 = vmax.xlane.f32.xlu0 %v370
    %v372 = vpop.xlane.xlu0 %371
    %v373 = vsel %vm357, %v305, -inf
    %374 = vmax.xlane.f32.xlu0 %v373
    %v375 = vpop.xlane.xlu0 %374
    %v376 = vsel %vm357, %v351, -inf
    %377 = vmax.xlane.f32.xlu0 %v376
    %v378 = vpop.xlane.xlu0 %377
    %v379 = vsel %vm357, %v354, -inf
    %380 = vmax.xlane.f32.xlu0 %v379
    %v381 = vpop.xlane.xlu0 %380
    %v382 = vsub.f32 %v204, %v360
    %v383 = vsub.f32 %v207, %v363
    %v384 = vsub.f32 %v253, %v366
    %v385 = vsub.f32 %v256, %v369
    %v386 = vsub.f32 %v302, %v372
    %v387 = vsub.f32 %v305, %v375
    %v388 = vsub.f32 %v351, %v378
    %v389 = vsub.f32 %v354, %v381
    %v390 = vmul.f32 %v382, 1.442695
    %v391 = vpow.pop %v390
    %v392 = vmul.f32 %v383, 1.442695
    %v393 = vpow.pop %v392
    %v394 = vmul.f32 %v384, 1.442695
    %v395 = vpow.pop %v394
    %v396 = vmul.f32 %v385, 1.442695
    %v397 = vpow.pop %v396
    %v398 = vmul.f32 %v386, 1.442695
    %v399 = vpow.pop %v398
    %v400 = vmul.f32 %v387, 1.442695
    %v401 = vpow.pop %v400
    %v402 = vmul.f32 %v388, 1.442695
    %v403 = vpow.pop %v402
    %v404 = vmul.f32 %v389, 1.442695
    %v405 = vpow.pop %v404
    %v406 = vsel %vm357, %v391, 0.0
    %407 = vadd.xlane.f32.xlu0 %v406
    %v408 = vpop.xlane.xlu0 %407
    %v409 = vsel %vm357, %v393, 0.0
    %410 = vadd.xlane.f32.xlu0 %v409
    %v411 = vpop.xlane.xlu0 %410
    %v412 = vsel %vm357, %v395, 0.0
    %413 = vadd.xlane.f32.xlu0 %v412
    %v414 = vpop.xlane.xlu0 %413
    %v415 = vsel %vm357, %v397, 0.0
    %416 = vadd.xlane.f32.xlu0 %v415
    %v417 = vpop.xlane.xlu0 %416
    %v418 = vsel %vm357, %v399, 0.0
    %419 = vadd.xlane.f32.xlu0 %v418
    %v420 = vpop.xlane.xlu0 %419
    %v421 = vsel %vm357, %v401, 0.0
    %422 = vadd.xlane.f32.xlu0 %v421
    %v423 = vpop.xlane.xlu0 %422
    %v424 = vsel %vm357, %v403, 0.0
    %425 = vadd.xlane.f32.xlu0 %v424
    %v426 = vpop.xlane.xlu0 %425
    %v427 = vsel %vm357, %v405, 0.0
    %428 = vadd.xlane.f32.xlu0 %v427
    %v429 = vpop.xlane.xlu0 %428
    %v430 = vpack.c.bf16 %v393, %v391
    %v431 = vpack.c.bf16 %v397, %v395
    %v432 = vpack.c.bf16 %v401, %v399
    %v433 = vpack.c.bf16 %v405, %v403
    %434 = vrot.lane.b32.xlu0 %v140, 64
    %v435 = vpop.permute.xlu0 %434
    %v438 = vsel %vm357, %v430, 0
    %440 = vmatprep.subr.bf16.mxu0 0
    %441 = vmatpush1.bf16.msra.mxu0 %v435
    %442 = vmatprep.subr.bf16.mxu0 0
    %443 = vmatpush1.bf16.msra.mxu0 0
    %444 = vmatprep.subr.bf16.mxu0 0
    %445 = vmatpush1.bf16.msra.mxu0 0
    %446 = vmatprep.subr.bf16.mxu0 0
    %447 = vmatpush1.bf16.msra.mxu0 0
    %448 = vmatprep.subr.bf16.mxu0 0
    %449 = vmatpush1.bf16.msra.mxu0 0
    %450 = vmatprep.subr.bf16.mxu0 0
    %451 = vmatpush1.bf16.msra.mxu0 0
    %452 = vmatprep.subr.bf16.mxu0 0
    %453 = vmatpush1.bf16.msra.mxu0 0
    %454 = vmatprep.subr.bf16.mxu0 0
    %455 = vmatpush1.bf16.msra.mxu0 0
    %456 = vmatprep.subr.bf16.mxu0 0
    %457 = vmatpush1.bf16.msra.mxu0 0
    %458 = vmatprep.subr.bf16.mxu0 0
    %459 = vmatpush1.bf16.msra.mxu0 0
    %460 = vmatprep.subr.bf16.mxu0 0
    %461 = vmatpush1.bf16.msra.mxu0 0
    %462 = vmatprep.subr.bf16.mxu0 0
    %463 = vmatpush1.bf16.msra.mxu0 0
    %464 = vmatprep.subr.bf16.mxu0 0
    %465 = vmatpush1.bf16.msra.mxu0 0
    %466 = vmatprep.subr.bf16.mxu0 0
    %467 = vmatpush1.bf16.msra.mxu0 0
    %468 = vmatprep.subr.bf16.mxu0 0
    %469 = vmatpush1.bf16.msra.mxu0 0
    %470 = vmatprep.subr.bf16.mxu0 0
    %471 = vmatpush1.bf16.msra.mxu0 0
    %472 = vmatprep.mubr.bf16.mxu0 0
    %473 = vmatmul.mubr.bf16.gmra.mrb[0].mxu0 %v438
    %v474 = vpop.f32.mrb[0].mxu0
    %v475 = vadd.f32 0.0, %v474
    %v476 = vpop.f32.mrb[0].mxu0
    %v477 = vpop.f32.mrb[0].mxu0
    %v478 = vadd.f32 0.0, %v477
    %v479 = vpop.f32.mrb[0].mxu0
    %480 = vdwg.mxu0
    %481 = vrot.lane.b32.xlu0 %v143, 64
    %v482 = vpop.permute.xlu0 %481
    %v485 = vsel %vm357, %v431, 0
    %487 = vmatprep.subr.bf16.mxu0 0
    %488 = vmatpush1.bf16.msra.mxu0 %v482
    %489 = vmatprep.subr.bf16.mxu0 0
    %490 = vmatpush1.bf16.msra.mxu0 0
    %491 = vmatprep.subr.bf16.mxu0 0
    %492 = vmatpush1.bf16.msra.mxu0 0
    %493 = vmatprep.subr.bf16.mxu0 0
    %494 = vmatpush1.bf16.msra.mxu0 0
    %495 = vmatprep.subr.bf16.mxu0 0
    %496 = vmatpush1.bf16.msra.mxu0 0
    %497 = vmatprep.subr.bf16.mxu0 0
    %498 = vmatpush1.bf16.msra.mxu0 0
    %499 = vmatprep.subr.bf16.mxu0 0
    %500 = vmatpush1.bf16.msra.mxu0 0
    %501 = vmatprep.subr.bf16.mxu0 0
    %502 = vmatpush1.bf16.msra.mxu0 0
    %503 = vmatprep.subr.bf16.mxu0 0
    %504 = vmatpush1.bf16.msra.mxu0 0
    %505 = vmatprep.subr.bf16.mxu0 0
    %506 = vmatpush1.bf16.msra.mxu0 0
    %507 = vmatprep.subr.bf16.mxu0 0
    %508 = vmatpush1.bf16.msra.mxu0 0
    %509 = vmatprep.subr.bf16.mxu0 0
    %510 = vmatpush1.bf16.msra.mxu0 0
    %511 = vmatprep.subr.bf16.mxu0 0
    %512 = vmatpush1.bf16.msra.mxu0 0
    %513 = vmatprep.subr.bf16.mxu0 0
    %514 = vmatpush1.bf16.msra.mxu0 0
    %515 = vmatprep.subr.bf16.mxu0 0
    %516 = vmatpush1.bf16.msra.mxu0 0
    %517 = vmatprep.subr.bf16.mxu0 0
    %518 = vmatpush1.bf16.msra.mxu0 0
    %519 = vmatprep.mubr.bf16.mxu0 0
    %520 = vmatmul.mubr.bf16.gmra.mrb[0].mxu0 %v485
    %v521 = vpop.f32.mrb[0].mxu0
    %v522 = vadd.f32 0.0, %v521
    %v523 = vpop.f32.mrb[0].mxu0
    %v524 = vpop.f32.mrb[0].mxu0
    %v525 = vadd.f32 0.0, %v524
    %v526 = vpop.f32.mrb[0].mxu0
    %527 = vdwg.mxu0
    %528 = vrot.lane.b32.xlu0 %v145, 64
    %v529 = vpop.permute.xlu0 %528
    %v532 = vsel %vm357, %v432, 0
    %534 = vmatprep.subr.bf16.mxu0 0
    %535 = vmatpush1.bf16.msra.mxu0 %v529
    %536 = vmatprep.subr.bf16.mxu0 0
    %537 = vmatpush1.bf16.msra.mxu0 0
    %538 = vmatprep.subr.bf16.mxu0 0
    %539 = vmatpush1.bf16.msra.mxu0 0
    %540 = vmatprep.subr.bf16.mxu0 0
    %541 = vmatpush1.bf16.msra.mxu0 0
    %542 = vmatprep.subr.bf16.mxu0 0
    %543 = vmatpush1.bf16.msra.mxu0 0
    %544 = vmatprep.subr.bf16.mxu0 0
    %545 = vmatpush1.bf16.msra.mxu0 0
    %546 = vmatprep.subr.bf16.mxu0 0
    %547 = vmatpush1.bf16.msra.mxu0 0
    %548 = vmatprep.subr.bf16.mxu0 0
    %549 = vmatpush1.bf16.msra.mxu0 0
    %550 = vmatprep.subr.bf16.mxu0 0
    %551 = vmatpush1.bf16.msra.mxu0 0
    %552 = vmatprep.subr.bf16.mxu0 0
    %553 = vmatpush1.bf16.msra.mxu0 0
    %554 = vmatprep.subr.bf16.mxu0 0
    %555 = vmatpush1.bf16.msra.mxu0 0
    %556 = vmatprep.subr.bf16.mxu0 0
    %557 = vmatpush1.bf16.msra.mxu0 0
    %558 = vmatprep.subr.bf16.mxu0 0
    %559 = vmatpush1.bf16.msra.mxu0 0
    %560 = vmatprep.subr.bf16.mxu0 0
    %561 = vmatpush1.bf16.msra.mxu0 0
    %562 = vmatprep.subr.bf16.mxu0 0
    %563 = vmatpush1.bf16.msra.mxu0 0
    %564 = vmatprep.subr.bf16.mxu0 0
    %565 = vmatpush1.bf16.msra.mxu0 0
    %566 = vmatprep.mubr.bf16.mxu0 0
    %567 = vmatmul.mubr.bf16.gmra.mrb[0].mxu0 %v532
    %v568 = vpop.f32.mrb[0].mxu0
    %v569 = vadd.f32 0.0, %v568
    %v570 = vpop.f32.mrb[0].mxu0
    %v571 = vpop.f32.mrb[0].mxu0
    %v572 = vadd.f32 0.0, %v571
    %v573 = vpop.f32.mrb[0].mxu0
    %574 = vdwg.mxu0
    %575 = vrot.lane.b32.xlu0 %v147, 64
    %v576 = vpop.permute.xlu0 %575
    %v579 = vsel %vm357, %v433, 0
    %581 = vmatprep.subr.bf16.mxu0 0
    %582 = vmatpush1.bf16.msra.mxu0 %v576
    %583 = vmatprep.subr.bf16.mxu0 0
    %584 = vmatpush1.bf16.msra.mxu0 0
    %585 = vmatprep.subr.bf16.mxu0 0
    %586 = vmatpush1.bf16.msra.mxu0 0
    %587 = vmatprep.subr.bf16.mxu0 0
    %588 = vmatpush1.bf16.msra.mxu0 0
    %589 = vmatprep.subr.bf16.mxu0 0
    %590 = vmatpush1.bf16.msra.mxu0 0
    %591 = vmatprep.subr.bf16.mxu0 0
    %592 = vmatpush1.bf16.msra.mxu0 0
    %593 = vmatprep.subr.bf16.mxu0 0
    %594 = vmatpush1.bf16.msra.mxu0 0
    %595 = vmatprep.subr.bf16.mxu0 0
    %596 = vmatpush1.bf16.msra.mxu0 0
    %597 = vmatprep.subr.bf16.mxu0 0
    %598 = vmatpush1.bf16.msra.mxu0 0
    %599 = vmatprep.subr.bf16.mxu0 0
    %600 = vmatpush1.bf16.msra.mxu0 0
    %601 = vmatprep.subr.bf16.mxu0 0
    %602 = vmatpush1.bf16.msra.mxu0 0
    %603 = vmatprep.subr.bf16.mxu0 0
    %604 = vmatpush1.bf16.msra.mxu0 0
    %605 = vmatprep.subr.bf16.mxu0 0
    %606 = vmatpush1.bf16.msra.mxu0 0
    %607 = vmatprep.subr.bf16.mxu0 0
    %608 = vmatpush1.bf16.msra.mxu0 0
    %609 = vmatprep.subr.bf16.mxu0 0
    %610 = vmatpush1.bf16.msra.mxu0 0
    %611 = vmatprep.subr.bf16.mxu0 0
    %612 = vmatpush1.bf16.msra.mxu0 0
    %613 = vmatprep.mubr.bf16.mxu0 0
    %614 = vmatmul.mubr.bf16.gmra.mrb[0].mxu0 %v579
    %v615 = vpop.f32.mrb[0].mxu0
    %v616 = vadd.f32 0.0, %v615
    %v617 = vpop.f32.mrb[0].mxu0
    %v618 = vpop.f32.mrb[0].mxu0
    %v619 = vadd.f32 0.0, %v618
    %v620 = vpop.f32.mrb[0].mxu0
    %621 = vdwg.mxu0
    %v622 = vrcp.pop %v408
    %v623 = vrcp.pop %v411
    %v624 = vrcp.pop %v414
    %v625 = vrcp.pop %v417
    %v626 = vrcp.pop %v420
    %v627 = vrcp.pop %v423
    %v628 = vrcp.pop %v426
    %v629 = vrcp.pop %v429
    %v630 = vmul.f32 %v475, %v622
    %v631 = vmul.f32 %v478, %v623
    %v632 = vmul.f32 %v522, %v624
    %v633 = vmul.f32 %v525, %v625
    %v634 = vmul.f32 %v569, %v626
    %v635 = vmul.f32 %v572, %v627
    %v636 = vmul.f32 %v616, %v628
    %v637 = vmul.f32 %v619, %v629
    %640 = vrot.lane.b32.xlu0 %v632, 8
    %v641 = vpop.permute.xlu0 %640
    %642 = vrot.lane.b32.xlu0 %v633, 8
    %v643 = vpop.permute.xlu0 %642
    %648 = vrot.lane.b32.xlu0 %v634, 16
    %v649 = vpop.permute.xlu0 %648
    %650 = vrot.lane.b32.xlu0 %v635, 16
    %v651 = vpop.permute.xlu0 %650
    %656 = vrot.lane.b32.xlu0 %v636, 24
    %v657 = vpop.permute.xlu0 %656
    %658 = vrot.lane.b32.xlu0 %v637, 24
    %v659 = vpop.permute.xlu0 %658
    %v662 = vsel %vm162, %v630, %v641
    %v663 = vsel %vm162, %v631, %v643
    %v664 = vsel %vm357, %v662, %v649
    %v665 = vsel %vm357, %v663, %v651
    %vm666 = vcmask 195584
    %v667 = vsel %vm666, %v664, %v657
    %v668 = vsel %vm666, %v665, %v659
    %v669 = vpack.c.bf16 %v668, %v667
    %v670 = vlaneseq
    %v671 = vshrl.u32 %v670, 7
    %v672 = vsub.s32 1, %v671
    %v673 = vrot.slane %v75, %v672
    %v678 = vunpack.c.l.b16 %v59
    %v679 = vunpack.c.l.b16 %v60
    %v680 = vunpack.c.l.b16 %v61
    %v681 = vunpack.c.l.b16 %v62
    %v682 = vpack.c.b16 %v679, %v678
    %v683 = vpack.c.b16 %v681, %v680
    %v687 = vsel %vm95, %v669, 0
    %689 = vmatprep.subr.bf16.mxu0 0
    %690 = vmatpush1.bf16.msra.mxu0 %v682
    %691 = vmatprep.subr.bf16.mxu0 0
    %692 = vmatpush1.bf16.msra.mxu0 %v683
    %693 = vmatprep.subr.bf16.mxu0 0
    %694 = vmatpush1.bf16.msra.mxu0 0
    %695 = vmatprep.subr.bf16.mxu0 0
    %696 = vmatpush1.bf16.msra.mxu0 0
    %697 = vmatprep.subr.bf16.mxu0 0
    %698 = vmatpush1.bf16.msra.mxu0 0
    %699 = vmatprep.subr.bf16.mxu0 0
    %700 = vmatpush1.bf16.msra.mxu0 0
    %701 = vmatprep.subr.bf16.mxu0 0
    %702 = vmatpush1.bf16.msra.mxu0 0
    %703 = vmatprep.subr.bf16.mxu0 0
    %704 = vmatpush1.bf16.msra.mxu0 0
    %705 = vmatprep.subr.bf16.mxu0 0
    %706 = vmatpush1.bf16.msra.mxu0 0
    %707 = vmatprep.subr.bf16.mxu0 0
    %708 = vmatpush1.bf16.msra.mxu0 0
    %709 = vmatprep.subr.bf16.mxu0 0
    %710 = vmatpush1.bf16.msra.mxu0 0
    %711 = vmatprep.subr.bf16.mxu0 0
    %712 = vmatpush1.bf16.msra.mxu0 0
    %713 = vmatprep.subr.bf16.mxu0 0
    %714 = vmatpush1.bf16.msra.mxu0 0
    %715 = vmatprep.subr.bf16.mxu0 0
    %716 = vmatpush1.bf16.msra.mxu0 0
    %717 = vmatprep.subr.bf16.mxu0 0
    %718 = vmatpush1.bf16.msra.mxu0 0
    %719 = vmatprep.subr.bf16.mxu0 0
    %720 = vmatpush1.bf16.msra.mxu0 0
    %721 = vmatprep.mubr.bf16.mxu0 0
    %722 = vmatmul.mubr.bf16.gmra.mrb[0].mxu0 %v687
    %v723 = vpop.f32.mrb[0].mxu0
    %v724 = vadd.f32 %v673, %v723
    %v725 = vpop.f32.mrb[0].mxu0
    %v726 = vpop.f32.mrb[0].mxu0
    %v727 = vadd.f32 %v673, %v726
    %v728 = vpop.f32.mrb[0].mxu0
    %729 = vdwg.mxu0
    %v730 = vadd.f32 %v76, %v724
    %v731 = vadd.f32 %v77, %v727
    %v732 = vsel %vm95, %v730, 0.0
    %733 = vadd.xlane.f32.xlu0 %v732
    %v734 = vpop.xlane.xlu0 %733
    %v735 = vsel %vm95, %v731, 0.0
    %736 = vadd.xlane.f32.xlu0 %v735
    %v737 = vpop.xlane.xlu0 %736
    %v738 = vrcp.pop 32.0
    %v739 = vmul.f32 %v734, %v738
    %v740 = vmul.f32 %v737, %v738
    %v741 = vsub.f32 %v730, %v739
    %v742 = vsub.f32 %v731, %v740
    %v743 = vmul.f32 %v741, %v741
    %v744 = vmul.f32 %v742, %v742
    %v745 = vsel %vm95, %v743, 0.0
    %746 = vadd.xlane.f32.xlu0 %v745
    %v747 = vpop.xlane.xlu0 %746
    %v748 = vsel %vm95, %v744, 0.0
    %749 = vadd.xlane.f32.xlu0 %v748
    %v750 = vpop.xlane.xlu0 %749
    %v751 = vmul.f32 %v747, %v738
    %v752 = vmul.f32 %v750, %v738
    %v753 = vadd.f32 %v751, 1e-05
    %v754 = vadd.f32 %v752, 1e-05
    %v755 = vrsqrt.pop %v753
    %v756 = vrsqrt.pop %v754
    %v757 = vmul.f32 %v741, %v755
    %v758 = vmul.f32 %v742, %v756
    %v759 = vlaneseq
    %v760 = vshrl.u32 %v759, 7
    %v761 = vsub.s32 4, %v760
    %v762 = vrot.slane %v75, %v761
    %v763 = vmul.f32 %v757, %v762
    %v764 = vmul.f32 %v758, %v762
    %v765 = vlaneseq
    %v766 = vshrl.u32 %v765, 7
    %v767 = vsub.s32 5, %v766
    %v768 = vrot.slane %v75, %v767
    %v769 = vadd.f32 %v763, %v768
    %v770 = vadd.f32 %v764, %v768
    %v771 = vpack.c.bf16 %v770, %v769
    %v772 = vlaneseq
    %v773 = vshrl.u32 %v772, 7
    %v774 = vsub.s32 2, %v773
    %v775 = vrot.slane %v75, %v774
    %v780 = vunpack.c.l.b16 %v63
    %v781 = vunpack.c.l.b16 %v64
    %v782 = vunpack.c.l.b16 %v65
    %v783 = vunpack.c.l.b16 %v66
    %v784 = vpack.c.b16 %v781, %v780
    %v785 = vpack.c.b16 %v783, %v782
    %v789 = vsel %vm95, %v771, 0
    %791 = vmatprep.subr.bf16.mxu0 0
    %792 = vmatpush1.bf16.msra.mxu0 %v784
    %793 = vmatprep.subr.bf16.mxu0 0
    %794 = vmatpush1.bf16.msra.mxu0 %v785
    %795 = vmatprep.subr.bf16.mxu0 0
    %796 = vmatpush1.bf16.msra.mxu0 0
    %797 = vmatprep.subr.bf16.mxu0 0
    %798 = vmatpush1.bf16.msra.mxu0 0
    %799 = vmatprep.subr.bf16.mxu0 0
    %800 = vmatpush1.bf16.msra.mxu0 0
    %801 = vmatprep.subr.bf16.mxu0 0
    %802 = vmatpush1.bf16.msra.mxu0 0
    %803 = vmatprep.subr.bf16.mxu0 0
    %804 = vmatpush1.bf16.msra.mxu0 0
    %805 = vmatprep.subr.bf16.mxu0 0
    %806 = vmatpush1.bf16.msra.mxu0 0
    %807 = vmatprep.subr.bf16.mxu0 0
    %808 = vmatpush1.bf16.msra.mxu0 0
    %809 = vmatprep.subr.bf16.mxu0 0
    %810 = vmatpush1.bf16.msra.mxu0 0
    %811 = vmatprep.subr.bf16.mxu0 0
    %812 = vmatpush1.bf16.msra.mxu0 0
    %813 = vmatprep.subr.bf16.mxu0 0
    %814 = vmatpush1.bf16.msra.mxu0 0
    %815 = vmatprep.subr.bf16.mxu0 0
    %816 = vmatpush1.bf16.msra.mxu0 0
    %817 = vmatprep.subr.bf16.mxu0 0
    %818 = vmatpush1.bf16.msra.mxu0 0
    %819 = vmatprep.subr.bf16.mxu0 0
    %820 = vmatpush1.bf16.msra.mxu0 0
    %821 = vmatprep.subr.bf16.mxu0 0
    %822 = vmatpush1.bf16.msra.mxu0 0
    %823 = vmatprep.mubr.bf16.mxu0 0
    %824 = vmatmul.mubr.bf16.gmra.mrb[0].mxu0 %v789
    %v825 = vpop.f32.mrb[0].mxu0
    %v826 = vadd.f32 %v775, %v825
    %v827 = vpop.f32.mrb[0].mxu0
    %v828 = vpop.f32.mrb[0].mxu0
    %v829 = vadd.f32 %v775, %v828
    %v830 = vpop.f32.mrb[0].mxu0
    %831 = vdwg.mxu0
    %v832 = vmax.f32 %v826, 0.0
    %v833 = vmax.f32 %v829, 0.0
    %v834 = vpack.c.bf16 %v833, %v832
    %v835 = vlaneseq
    %v836 = vshrl.u32 %v835, 7
    %v837 = vsub.s32 3, %v836
    %v838 = vrot.slane %v75, %v837
    %v847 = vunpack.c.l.b16 %v67
    %v848 = vunpack.c.l.b16 %v68
    %v849 = vunpack.c.l.b16 %v69
    %v850 = vunpack.c.l.b16 %v70
    %v851 = vunpack.c.l.b16 %v71
    %v852 = vunpack.c.l.b16 %v72
    %v853 = vunpack.c.l.b16 %v73
    %v854 = vunpack.c.l.b16 %v74
    %v855 = vpack.c.b16 %v848, %v847
    %v856 = vpack.c.b16 %v850, %v849
    %v857 = vpack.c.b16 %v852, %v851
    %v858 = vpack.c.b16 %v854, %v853
    %vm863 = vcmask 523264
    %v865 = vsel %vm863, %v834, 0
    %867 = vmatprep.subr.bf16.mxu0 0
    %868 = vmatpush1.bf16.msra.mxu0 %v855
    %869 = vmatprep.subr.bf16.mxu0 0
    %870 = vmatpush1.bf16.msra.mxu0 %v856
    %871 = vmatprep.subr.bf16.mxu0 0
    %872 = vmatpush1.bf16.msra.mxu0 %v857
    %873 = vmatprep.subr.bf16.mxu0 0
    %874 = vmatpush1.bf16.msra.mxu0 %v858
    %875 = vmatprep.subr.bf16.mxu0 0
    %876 = vmatpush1.bf16.msra.mxu0 0
    %877 = vmatprep.subr.bf16.mxu0 0
    %878 = vmatpush1.bf16.msra.mxu0 0
    %879 = vmatprep.subr.bf16.mxu0 0
    %880 = vmatpush1.bf16.msra.mxu0 0
    %881 = vmatprep.subr.bf16.mxu0 0
    %882 = vmatpush1.bf16.msra.mxu0 0
    %883 = vmatprep.subr.bf16.mxu0 0
    %884 = vmatpush1.bf16.msra.mxu0 0
    %885 = vmatprep.subr.bf16.mxu0 0
    %886 = vmatpush1.bf16.msra.mxu0 0
    %887 = vmatprep.subr.bf16.mxu0 0
    %888 = vmatpush1.bf16.msra.mxu0 0
    %889 = vmatprep.subr.bf16.mxu0 0
    %890 = vmatpush1.bf16.msra.mxu0 0
    %891 = vmatprep.subr.bf16.mxu0 0
    %892 = vmatpush1.bf16.msra.mxu0 0
    %893 = vmatprep.subr.bf16.mxu0 0
    %894 = vmatpush1.bf16.msra.mxu0 0
    %895 = vmatprep.subr.bf16.mxu0 0
    %896 = vmatpush1.bf16.msra.mxu0 0
    %897 = vmatprep.subr.bf16.mxu0 0
    %898 = vmatpush1.bf16.msra.mxu0 0
    %899 = vmatprep.mubr.bf16.mxu0 0
    %900 = vmatmul.mubr.bf16.gmra.mrb[0].mxu0 %v865
    %v901 = vpop.f32.mrb[0].mxu0
    %v902 = vadd.f32 %v838, %v901
    %v903 = vpop.f32.mrb[0].mxu0
    %v904 = vpop.f32.mrb[0].mxu0
    %v905 = vadd.f32 %v838, %v904
    %v906 = vpop.f32.mrb[0].mxu0
    %907 = vdwg.mxu0
    %v908 = vadd.f32 %v769, %v902
    %v909 = vadd.f32 %v770, %v905
    %v910 = vsel %vm95, %v908, 0.0
    %911 = vadd.xlane.f32.xlu0 %v910
    %v912 = vpop.xlane.xlu0 %911
    %v913 = vsel %vm95, %v909, 0.0
    %914 = vadd.xlane.f32.xlu0 %v913
    %v915 = vpop.xlane.xlu0 %914
    %v916 = vmul.f32 %v912, %v738
    %v917 = vmul.f32 %v915, %v738
    %v918 = vsub.f32 %v908, %v916
    %v919 = vsub.f32 %v909, %v917
    %v920 = vmul.f32 %v918, %v918
    %v921 = vmul.f32 %v919, %v919
    %v922 = vsel %vm95, %v920, 0.0
    %923 = vadd.xlane.f32.xlu0 %v922
    %v924 = vpop.xlane.xlu0 %923
    %v925 = vsel %vm95, %v921, 0.0
    %926 = vadd.xlane.f32.xlu0 %v925
    %v927 = vpop.xlane.xlu0 %926
    %v928 = vmul.f32 %v924, %v738
    %v929 = vmul.f32 %v927, %v738
    %v930 = vadd.f32 %v928, 1e-05
    %v931 = vadd.f32 %v929, 1e-05
    %v932 = vrsqrt.pop %v930
    %v933 = vrsqrt.pop %v931
    %v934 = vmul.f32 %v918, %v932
    %v935 = vmul.f32 %v919, %v933
    %v936 = vlaneseq
    %v937 = vshrl.u32 %v936, 7
    %v938 = vsub.s32 6, %v937
    %v939 = vrot.slane %v75, %v938
    %v940 = vmul.f32 %v934, %v939
    %v941 = vmul.f32 %v935, %v939
    %v942 = vlaneseq
    %v943 = vshrl.u32 %v942, 7
    %v944 = vsub.s32 7, %v943
    %v945 = vrot.slane %v75, %v944
    %v946 = vadd.f32 %v940, %v945
    %v947 = vadd.f32 %v941, %v945
    %948 = vst.msk [vmem:[#allocation8] sm:$0xff] %vm95, %v946
    %949 = vst.msk [vmem:[#allocation8 + $0x8] sm:$0xff] %vm95, %v947
    // Predicated region
    $region26: #{_encoder_block.1} parent=1 // pred_check
      _
    $region27: #{_encoder_block.1} parent=1 // pred_check_branch
      %951 = sbr.rel (0) target = $region29
    $region28: #{_encoder_block.1} parent=1 // pred_region
      %s953 = ssub.s32 256, 256
      %954 = vsyncadd [#allocation4], %s953
      %s955 = sshll.u32 [#allocation8], 4
      %s956 = int_to_ptr.vmem [resolvable:$true] %s955
      %961 = dma.vmem_to_hbm [thread:$0]  %s956, 256, %s3, [#allocation4], 128, 128, 8
    $region29: #{_encoder_block.1} parent=1 // pred_fallthru
      _
    // Predicated region
    $region30: #{_encoder_block.1} parent=1 // pred_check
      _
    $region31: #{_encoder_block.1} parent=1 // pred_check_branch
      %963 = sbr.rel (0) target = $region33
    $region32: #{_encoder_block.1} parent=1 // pred_region
      %964 = dma.done [#allocation4], 256
    $region33: #{_encoder_block.1} parent=1 // pred_fallthru
      _
    %965 = vsyncpa [#allocation3], 1
    %966 = vsyncpa [#allocation6], 1
    %967 = vsyncpa [#allocation4], 1

</llo_original>
